<compile_context>
chip_gen: v7x
topology: tpu7x:2x2x1
jax: 0.10.0
libtpu: 0.0.40
codegen_flags: <defaults>
</compile_context>

<pallas_src>
import functools

import jax
import jax.numpy as jnp
from jax import lax
from jax.experimental import pallas as pl
from jax.experimental.pallas import tpu as pltpu

ALPHA = 0.25
GAMMA = 2.0
EPS = 1e-8

LANES = 128          # lane width
SUB = 8              # f32 sublane count  -> rows kept a multiple of 8
MAX_ROW_TILE = 1024  # (1024, 128) f32 block = 512 KiB per input buffer


def _focal_loss_kernel(x_ref, t_ref, out_ref, acc_ref, *, alpha, gamma, eps,
                       n_valid, row_tile, inner_steps):
    c = pl.program_id(0)   # core-split axis ("parallel")
    i = pl.program_id(1)   # row-tile sweep  ("arbitrary", accumulated)

    @pl.when(i == 0)
    def _():
        acc_ref[...] = jnp.zeros_like(acc_ref)

    # Cast to f32 in-kernel (inputs may arrive as bf16/etc.).
    x = x_ref[...].astype(jnp.float32)
    t = t_ref[...].astype(jnp.float32)

    # Same clamp as the PyTorch module.
    x = jnp.clip(x, eps, 1.0 - eps)

    bce = -(t * jnp.log(x) + (1.0 - t) * jnp.log(1.0 - x))
    pt = jnp.where(t == 1.0, x, 1.0 - x)
    one_m_pt = 1.0 - pt
    if float(gamma) == int(gamma):
        # gamma=2 (default) -> a single VPU multiply instead of EUP exp/log pow.
        mod = one_m_pt ** int(gamma)
    else:
        mod = one_m_pt ** jnp.float32(gamma)
    focal = alpha * mod * bce

    # In-kernel validity mask (replaces the old full-size f32 mask stream).
    # jnp.where (not multiply) so NaN/inf in ragged-tail garbage cannot leak.
    block_id = c * inner_steps + i
    base_row = block_id * row_tile
    row_ids = lax.broadcasted_iota(jnp.int32, (row_tile, LANES), 0)
    col_ids = lax.broadcasted_iota(jnp.int32, (row_tile, LANES), 1)
    flat_idx = (base_row + row_ids) * LANES + col_ids
    focal = jnp.where(flat_idx < n_valid, focal, 0.0)

    # Per-step partial sum: pure VPU adds across the tile's vregs into one
    # (8,128) vreg accumulator; the expensive cross-lane reduce is deferred.
    acc_ref[...] += jnp.sum(focal.reshape(row_tile // SUB, SUB, LANES), axis=0)

    @pl.when(i == pl.num_programs(1) - 1)
    def _():
        out_ref[...] = acc_ref[...]


def focal_loss(inputs, targets, *, alpha=ALPHA, gamma=GAMMA, eps=EPS,
               reduction="mean"):
    """Pallas TPU focal loss (reduction='mean' or 'sum')."""
    assert inputs.shape == targets.shape
    if reduction not in ("mean", "sum"):
        # TODO(synk): reduction='none' needs an elementwise-output kernel variant.
        raise NotImplementedError("reduction must be 'mean' or 'sum'")

    n_valid = inputs.size

    # Pass through the caller's dtype; cast happens inside the kernel.
    x = inputs.reshape(-1)
    t = targets.reshape(-1)

    # Only a tiny tail pad (< SUB*LANES elems) to make rows a multiple of 8;
    # no full-tensor mask array, no re-materialising pad of the whole tensor
    # beyond this minimal tail.
    chunk = SUB * LANES
    pad = (-n_valid) % chunk
    if pad:
        x = jnp.concatenate([x, jnp.zeros((pad,), x.dtype)])
        t = jnp.concatenate([t, jnp.zeros((pad,), t.dtype)])

    rows = (n_valid + pad) // LANES
    x = x.reshape(rows, LANES)
    t = t.reshape(rows, LANES)

    row_tile = min(MAX_ROW_TILE, rows)       # multiple of 8, <= rows
    n_blocks = pl.cdiv(rows, row_tile)       # last block may be ragged (masked)

    # Use both TensorCores on v7x when the block count splits evenly;
    # on v5e/v6e (single TC) this is just two sequential sweeps.
    num_splits = 2 if (n_blocks % 2 == 0) else 1
    inner_steps = n_blocks // num_splits

    tile_spec = pl.BlockSpec((row_tile, LANES),
                             lambda c, i: (c * inner_steps + i, 0))

    kernel = functools.partial(
        _focal_loss_kernel, alpha=float(alpha), gamma=float(gamma),
        eps=float(eps), n_valid=n_valid, row_tile=row_tile,
        inner_steps=inner_steps)

    partials = pl.pallas_call(
        kernel,
        out_shape=jax.ShapeDtypeStruct((num_splits * SUB, LANES), jnp.float32),
        grid_spec=pltpu.PrefetchScalarGridSpec(
            num_scalar_prefetch=0,
            grid=(num_splits, inner_steps),
            in_specs=[tile_spec, tile_spec],
            out_specs=pl.BlockSpec((SUB, LANES), lambda c, i: (c, 0)),
            scratch_shapes=[pltpu.VMEM((SUB, LANES), jnp.float32)],
        ),
        compiler_params=pltpu.CompilerParams(
            dimension_semantics=("parallel", "arbitrary")),
    )(x, t)

    total = jnp.sum(partials)  # one small cross-lane reduce, outside the kernel
    if reduction == "mean":
        return total / jnp.float32(n_valid)
    return total


def focal_loss_ref(inputs, targets, *, alpha=ALPHA, gamma=GAMMA, eps=EPS):
    x = jnp.clip(inputs.astype(jnp.float32), eps, 1.0 - eps)
    t = targets.astype(jnp.float32)
    bce = -(t * jnp.log(x) + (1.0 - t) * jnp.log(1.0 - x))
    pt = jnp.where(t == 1.0, x, 1.0 - x)
    return jnp.mean(alpha * (1.0 - pt) ** gamma * bce)


if __name__ == "__main__":
    key = jax.random.PRNGKey(0)
    k1, k2 = jax.random.split(key)

    # Small NCHW-shaped inputs: probabilities and {0,1} targets.
    shape = (2, 4, 16, 16)
    inputs = jax.nn.sigmoid(jax.random.normal(k1, shape, dtype=jnp.float32))
    targets = (jax.random.uniform(k2, shape) > 0.5).astype(jnp.float32)

    loss = focal_loss(inputs, targets)
    loss = jax.block_until_ready(loss)

    ref = focal_loss_ref(inputs, targets)
    assert jnp.allclose(loss, ref, rtol=1e-5, atol=1e-6), (loss, ref)

    print("KERNEL_OK")
</pallas_src>

<mosaic_0001>
module attributes {stable_mosaic.version = 11 : i64} {
  func.func @_focal_loss_kernel(%arg0: i32, %arg1: i32, %arg2: memref<16x128xf32, #tpu.memory_space<vmem>>, %arg3: memref<16x128xf32, #tpu.memory_space<vmem>>, %arg4: memref<8x128xf32, #tpu.memory_space<vmem>>, %arg5: memref<8x128xf32, #tpu.memory_space<vmem>>) attributes {dimension_semantics = [#tpu.dimension_semantics<parallel>, #tpu.dimension_semantics<arbitrary>], iteration_bounds = array<i64: 1, 1>, scalar_prefetch = 0 : i64, scratch_operands = 1 : i64, tpu.core_type = #tpu.core_type<tc>, window_params = [{transform_indices = @transform_0, window_bounds = array<i64: 16, 128>}, {transform_indices = @transform_1, window_bounds = array<i64: 16, 128>}, {transform_indices = @transform_2, window_bounds = array<i64: 8, 128>}]} {
    %c0_i32 = arith.constant 0 : i32
    %0 = arith.cmpi eq, %arg1, %c0_i32 : i32
    %1 = arith.extui %0 : i1 to i32
    %c0_i32_0 = arith.constant 0 : i32
    %2 = arith.cmpi ne, %1, %c0_i32_0 : i32
    scf.if %2 {
      %cst_20 = arith.constant 0.000000e+00 : f32
      %53 = vector.broadcast %cst_20 : f32 to vector<8x128xf32>
      %c0_21 = arith.constant 0 : index
      %c0_22 = arith.constant 0 : index
      %54 = vector.load %arg5[%c0_21, %c0_22] : memref<8x128xf32, #tpu.memory_space<vmem>>, vector<8x128xf32>
      tpu.vector_store %arg5[%c0_21, %c0_22], %53 {strides = array<i32>} : memref<8x128xf32, #tpu.memory_space<vmem>>, vector<8x128xf32>,
    } else {
    }
    %c0 = arith.constant 0 : index
    %c0_1 = arith.constant 0 : index
    %3 = vector.load %arg2[%c0, %c0_1] : memref<16x128xf32, #tpu.memory_space<vmem>>, vector<16x128xf32>
    %c0_2 = arith.constant 0 : index
    %c0_3 = arith.constant 0 : index
    %4 = vector.load %arg3[%c0_2, %c0_3] : memref<16x128xf32, #tpu.memory_space<vmem>>, vector<16x128xf32>
    %cst = arith.constant 9.99999993E-9 : f32
    %cst_4 = arith.constant 1.000000e+00 : f32
    %5 = vector.broadcast %cst : f32 to vector<16x128xf32>
    %6 = arith.maximumf %5, %3 : vector<16x128xf32>
    %7 = vector.broadcast %cst_4 : f32 to vector<16x128xf32>
    %8 = arith.minimumf %7, %6 : vector<16x128xf32>
    %9 = math.log %8 : vector<16x128xf32>
    %10 = arith.mulf %4, %9 : vector<16x128xf32>
    %cst_5 = arith.constant 1.000000e+00 : f32
    %11 = vector.broadcast %cst_5 : f32 to vector<16x128xf32>
    %12 = arith.subf %11, %4 : vector<16x128xf32>
    %cst_6 = arith.constant 1.000000e+00 : f32
    %13 = vector.broadcast %cst_6 : f32 to vector<16x128xf32>
    %14 = arith.subf %13, %8 : vector<16x128xf32>
    %15 = math.log %14 : vector<16x128xf32>
    %16 = arith.mulf %12, %15 : vector<16x128xf32>
    %17 = arith.addf %10, %16 : vector<16x128xf32>
    %cst_7 = arith.constant 0.000000e+00 : f32
    %18 = vector.broadcast %cst_7 : f32 to vector<16x128xf32>
    %19 = arith.subf %18, %17 : vector<16x128xf32>
    %cst_8 = arith.constant 1.000000e+00 : f32
    %20 = vector.broadcast %cst_8 : f32 to vector<16x128xf32>
    %21 = arith.cmpf oeq, %4, %20 : vector<16x128xf32>
    %cst_9 = arith.constant 1.000000e+00 : f32
    %22 = vector.broadcast %cst_9 : f32 to vector<16x128xf32>
    %23 = arith.subf %22, %8 : vector<16x128xf32>
    %24 = arith.select %21, %8, %23 : vector<16x128xi1>, vector<16x128xf32>
    %cst_10 = arith.constant 1.000000e+00 : f32
    %25 = vector.broadcast %cst_10 : f32 to vector<16x128xf32>
    %26 = arith.subf %25, %24 : vector<16x128xf32>
    %27 = arith.mulf %26, %26 : vector<16x128xf32>
    %cst_11 = arith.constant 2.500000e-01 : f32
    %28 = vector.broadcast %cst_11 : f32 to vector<16x128xf32>
    %29 = arith.mulf %28, %27 : vector<16x128xf32>
    %30 = arith.mulf %29, %19 : vector<16x128xf32>
    %c1_i32 = arith.constant 1 : i32
    %31 = arith.muli %arg0, %c1_i32 : i32
    %32 = arith.addi %31, %arg1 : i32
    %c16_i32 = arith.constant 16 : i32
    %33 = arith.muli %32, %c16_i32 : i32
    %34 = tpu.iota {dimensions = array<i32: 0>} : vector<16x128xi32>
    %35 = tpu.iota {dimensions = array<i32: 1>} : vector<16x128xi32>
    %36 = vector.broadcast %33 : i32 to vector<16x128xi32>
    %37 = arith.addi %36, %34 : vector<16x128xi32>
    %c128_i32 = arith.constant 128 : i32
    %38 = vector.broadcast %c128_i32 : i32 to vector<16x128xi32>
    %39 = arith.muli %37, %38 : vector<16x128xi32>
    %40 = arith.addi %39, %35 : vector<16x128xi32>
    %c2048_i32 = arith.constant 2048 : i32
    %41 = vector.broadcast %c2048_i32 : i32 to vector<16x128xi32>
    %42 = arith.cmpi slt, %40, %41 : vector<16x128xi32>
    %cst_12 = arith.constant 0.000000e+00 : f32
    %43 = vector.broadcast %cst_12 : f32 to vector<16x128xf32>
    %44 = arith.select %42, %30, %43 : vector<16x128xi1>, vector<16x128xf32>
    %c0_13 = arith.constant 0 : index
    %c0_14 = arith.constant 0 : index
    %45 = vector.load %arg5[%c0_13, %c0_14] : memref<8x128xf32, #tpu.memory_space<vmem>>, vector<8x128xf32>
    %46 = vector.shape_cast %44 : vector<16x128xf32> to vector<2x8x128xf32>
    %cst_15 = arith.constant dense<0.000000e+00> : vector<8x128xf32>
    %47 = vector.multi_reduction <add>, %46, %cst_15 [0] : vector<2x8x128xf32> to vector<8x128xf32>
    %48 = arith.addf %45, %47 : vector<8x128xf32>
    %c0_16 = arith.constant 0 : index
    %c0_17 = arith.constant 0 : index
    %49 = vector.load %arg5[%c0_16, %c0_17] : memref<8x128xf32, #tpu.memory_space<vmem>>, vector<8x128xf32>
    tpu.vector_store %arg5[%c0_16, %c0_17], %48 {strides = array<i32>} : memref<8x128xf32, #tpu.memory_space<vmem>>, vector<8x128xf32>,
    %c0_i32_18 = arith.constant 0 : i32
    %50 = arith.cmpi eq, %arg1, %c0_i32_18 : i32
    %51 = arith.extui %50 : i1 to i32
    %c0_i32_19 = arith.constant 0 : i32
    %52 = arith.cmpi ne, %51, %c0_i32_19 : i32
    scf.if %52 {
      %c0_20 = arith.constant 0 : index
      %c0_21 = arith.constant 0 : index
      %53 = vector.load %arg5[%c0_20, %c0_21] : memref<8x128xf32, #tpu.memory_space<vmem>>, vector<8x128xf32>
      %c0_22 = arith.constant 0 : index
      %c0_23 = arith.constant 0 : index
      %54 = vector.load %arg4[%c0_22, %c0_23] : memref<8x128xf32, #tpu.memory_space<vmem>>, vector<8x128xf32>
      tpu.vector_store %arg4[%c0_22, %c0_23], %53 {strides = array<i32>} : memref<8x128xf32, #tpu.memory_space<vmem>>, vector<8x128xf32>,
    } else {
    }
    return
  }
  func.func @transform_0(%arg0: i32, %arg1: i32) -> (i32, i32) {
    %c1_i32 = arith.constant 1 : i32
    %0 = arith.muli %arg0, %c1_i32 : i32
    %1 = arith.addi %0, %arg1 : i32
    %c0_i32 = arith.constant 0 : i32
    %c0_i32_0 = arith.constant 0 : i32
    return %1, %c0_i32 : i32, i32
  }
  func.func @transform_1(%arg0: i32, %arg1: i32) -> (i32, i32) {
    %c1_i32 = arith.constant 1 : i32
    %0 = arith.muli %arg0, %c1_i32 : i32
    %1 = arith.addi %0, %arg1 : i32
    %c0_i32 = arith.constant 0 : i32
    %c0_i32_0 = arith.constant 0 : i32
    return %1, %c0_i32 : i32, i32
  }
  func.func @transform_2(%arg0: i32, %arg1: i32) -> (i32, i32) {
    %c0_i32 = arith.constant 0 : i32
    %c0_i32_0 = arith.constant 0 : i32
    return %arg0, %c0_i32 : i32, i32
  }
}

</mosaic_0001>

<llo_original>
// kernel: tpu_custom_call.1
$region0: #{tpu_custom_call.1}
  #allocation0 [shape = 'u32[]', space=smem, size = 0x4, offset = 0x4, fixed_abs, tag = 'smem constant byte address 0x4 - core index']
  #allocation1 [shape = 'u32[144,128]{1,0:T(1,128)}', space=vmem, size = 0x12000, scoped, tag = 'internal scratch']
  #allocation2 [shape = 'f32[8,128]{1,0:T(8,128)}', space=vmem, size = 0x1000, scoped, tag = 'scratch operand']
  %s0 = inlined_call_operand.hbm [shape: f32[16,128], index: 0, kind: input, shape index: {}]
  %s1 = inlined_call_operand.hbm [shape: f32[16,128], index: 1, kind: input, shape index: {}]
  %s2 = inlined_call_operand.hbm [shape: f32[8,128], index: 2, kind: output, shape index: {}]
  %s3 = sld [smem:[#allocation0]]
  $region34: #{tpu_custom_call.1} parent=0
    _
  %s5 = ssub.s32 1, %s3
  %s6 = scalar_select 0, %s5, %s3
  $region1: #{tpu_custom_call.1} parent=0
    #allocation3 [shape = 'u8[8192]{0}', space=vmem, size = 0x2000, scoped, tag = 'input window, operand 0, single buffered']
    #allocation4 [shape = 's32[1]{0}', space=sflag, size = 0x4, scoped, tag = 'scoped memory for tpu_custom_call.1']
    #allocation5 [shape = 's32[1]{0}', space=sflag, size = 0x4, scoped, tag = 'scoped memory for tpu_custom_call.1']
    #allocation6 [shape = 'u8[8192]{0}', space=vmem, size = 0x2000, scoped, tag = 'input window, operand 1, single buffered']
    #allocation7 [shape = 's32[1]{0}', space=sflag, size = 0x4, scoped, tag = 'scoped memory for tpu_custom_call.1']
    #allocation8 [shape = 'u8[4096]{0}', space=vmem, size = 0x1000, scoped, tag = 'output window, operand 0, single buffered']
    %7 = vsyncpa [#allocation4], 0
    %8 = vsyncpa [#allocation7], 0
    %9 = vsyncpa [#allocation5], 0
    // Predicated region
    $region2: #{tpu_custom_call.1} parent=1 // pred_check
      _
    $region3: #{tpu_custom_call.1} parent=1 // pred_check_branch
      %11 = sbr.rel (0) target = $region5
    $region4: #{tpu_custom_call.1} parent=1 // pred_region
      %s12 = sadd.s32 0, 0
      %s13 = smul.u32 2, %s12
      %s15 = ssub.s32 256, 256
      %16 = vsyncadd [#allocation4], %s15
      %s17 = smul.addr %s13, 128
      %s18 = scalar_lea.hbm %s0, %s17
      %s19 = sshll.u32 [#allocation3], 4
      %s20 = int_to_ptr.vmem [resolvable:$true] %s19
      %25 = dma.hbm_to_vmem [thread:$0]  %s18, 256, %s20, [#allocation4], 128, 128, 8
    $region5: #{tpu_custom_call.1} parent=1 // pred_fallthru
      _
    // Predicated region
    $region6: #{tpu_custom_call.1} parent=1 // pred_check
      _
    $region7: #{tpu_custom_call.1} parent=1 // pred_check_branch
      %27 = sbr.rel (0) target = $region9
    $region8: #{tpu_custom_call.1} parent=1 // pred_region
      %s28 = sadd.s32 0, 0
      %s29 = smul.u32 2, %s28
      %s31 = ssub.s32 256, 256
      %32 = vsyncadd [#allocation7], %s31
      %s33 = smul.addr %s29, 128
      %s34 = scalar_lea.hbm %s1, %s33
      %s35 = sshll.u32 [#allocation6], 4
      %s36 = int_to_ptr.vmem [resolvable:$true] %s35
      %41 = dma.hbm_to_vmem [thread:$0]  %s34, 256, %s36, [#allocation7], 128, 128, 8
    $region9: #{tpu_custom_call.1} parent=1 // pred_fallthru
      _
    // Predicated region
    $region10: #{tpu_custom_call.1} parent=1 // pred_check
      _
    $region11: #{tpu_custom_call.1} parent=1 // pred_check_branch
      %43 = sbr.rel (0) target = $region13
    $region12: #{tpu_custom_call.1} parent=1 // pred_region
      %44 = dma.done [#allocation4], 256
    $region13: #{tpu_custom_call.1} parent=1 // pred_fallthru
      _
    // Predicated region
    $region14: #{tpu_custom_call.1} parent=1 // pred_check
      _
    $region15: #{tpu_custom_call.1} parent=1 // pred_check_branch
      %46 = sbr.rel (0) target = $region17
    $region16: #{tpu_custom_call.1} parent=1 // pred_region
      %47 = dma.done [#allocation7], 256
    $region17: #{tpu_custom_call.1} parent=1 // pred_fallthru
      _
    %s48 = sadd.s32 0, 0
    %s49 = smul.u32 2, %s48
    %s50 = sadd.s32 0, 0
    %s51 = smul.u32 2, %s50
    %p52 = scmp.eq.s32.totalorder 0, 0
    // Predicated region
    $region18: #{tpu_custom_call.1} parent=1 // pred_check
      %p53 = pneg %p52
    $region19: #{tpu_custom_call.1} parent=1 // pred_check_branch
      %55 = sbr.rel (%p53) target = $region21
    $region20: #{tpu_custom_call.1} parent=1 // pred_region
      %56 = vst [vmem:[#allocation2] sm:$0xff] 0.0
    $region21: #{tpu_custom_call.1} parent=1 // pred_fallthru
      _
    %v57 = vld [vmem:[#allocation3] sm:$0xff]
    %v58 = vld [vmem:[#allocation3 + $0x8] sm:$0xff]
    %v59 = vld [vmem:[#allocation6] sm:$0xff]
    %v60 = vld [vmem:[#allocation6 + $0x8] sm:$0xff]
    %v61 = vmax.f32 %v57, 1e-08
    %v62 = vmax.f32 %v58, 1e-08
    %v63 = vmin.f32 %v61, 1.0
    %v64 = vmin.f32 %v62, 1.0
    %v65 = vlog2.pop %v63
    %v66 = vmul.f32 %v65, 0.6931472
    %v67 = vlog2.pop %v64
    %v68 = vmul.f32 %v67, 0.6931472
    %v69 = vmul.f32 %v59, %v66
    %v70 = vmul.f32 %v60, %v68
    %v71 = vsub.f32 1.0, %v59
    %v72 = vsub.f32 1.0, %v60
    %v73 = vsub.f32 1.0, %v63
    %v74 = vsub.f32 1.0, %v64
    %v75 = vlog2.pop %v73
    %v76 = vmul.f32 %v75, 0.6931472
    %v77 = vlog2.pop %v74
    %v78 = vmul.f32 %v77, 0.6931472
    %v79 = vmul.f32 %v71, %v76
    %v80 = vmul.f32 %v72, %v78
    %v81 = vadd.f32 %v69, %v79
    %v82 = vadd.f32 %v70, %v80
    %v83 = vsub.f32 0.0, %v81
    %v84 = vsub.f32 0.0, %v82
    %vm85 = vcmp.eq.f32.partialorder %v59, 1.0
    %vm86 = vcmp.eq.f32.partialorder %v60, 1.0
    %v87 = vsel %vm85, %v63, %v73
    %v88 = vsel %vm86, %v64, %v74
    %v89 = vsub.f32 1.0, %v87
    %v90 = vsub.f32 1.0, %v88
    %v91 = vmul.f32 %v89, %v89
    %v92 = vmul.f32 %v90, %v90
    %v93 = vmul.f32 %v91, 0.25
    %v94 = vmul.f32 %v92, 0.25
    %v95 = vmul.f32 %v93, %v83
    %v96 = vmul.f32 %v94, %v84
    %s97 = sadd.s32 0, 0
    %s98 = smul.u32 %s97, 16
    %v99 = vlaneseq
    %v100 = vshrl.u32 %v99, 7
    %v101 = vadd.s32 %v100, 8
    %v102 = vlaneseq
    %v103 = vand.u32 %v102, 127
    %v104 = vstv %s98
    %v105 = vadd.s32 %v104, %v100
    %v106 = vadd.s32 %v104, %v101
    %v107 = vmul.u32 %v105, 128
    %v108 = vmul.u32 %v106, 128
    %v109 = vadd.s32 %v107, %v103
    %v110 = vadd.s32 %v108, %v103
    %vm111 = vcmp.lt.s32.totalorder %v109, 2048
    %vm112 = vcmp.lt.s32.totalorder %v110, 2048
    %v113 = vsel %vm111, %v95, 0.0
    %v114 = vsel %vm112, %v96, 0.0
    %v115 = vld [vmem:[#allocation2] sm:$0xff]
    %v116 = vadd.f32 %v113, %v114
    %v117 = vadd.f32 %v115, %v116
    %118 = vst [vmem:[#allocation2] sm:$0xff] %v117
    // Predicated region
    $region22: #{tpu_custom_call.1} parent=1 // pred_check
      %p119 = pneg %p52
    $region23: #{tpu_custom_call.1} parent=1 // pred_check_branch
      %121 = sbr.rel (%p119) target = $region25
    $region24: #{tpu_custom_call.1} parent=1 // pred_region
      %v122 = vld [vmem:[#allocation2] sm:$0xff]
      %123 = vst [vmem:[#allocation8] sm:$0xff] %v122
    $region25: #{tpu_custom_call.1} parent=1 // pred_fallthru
      _
    // Predicated region
    $region26: #{tpu_custom_call.1} parent=1 // pred_check
      _
    $region27: #{tpu_custom_call.1} parent=1 // pred_check_branch
      %125 = sbr.rel (0) target = $region29
    $region28: #{tpu_custom_call.1} parent=1 // pred_region
      %s127 = ssub.s32 128, 128
      %128 = vsyncadd [#allocation5], %s127
      %s130 = sshll.u32 [#allocation8], 4
      %s131 = int_to_ptr.vmem [resolvable:$true] %s130
      %133 = dma.vmem_to_hbm [thread:$0]  %s131, 128, %s2, [#allocation5]
    $region29: #{tpu_custom_call.1} parent=1 // pred_fallthru
      _
    // Predicated region
    $region30: #{tpu_custom_call.1} parent=1 // pred_check
      _
    $region31: #{tpu_custom_call.1} parent=1 // pred_check_branch
      %135 = sbr.rel (0) target = $region33
    $region32: #{tpu_custom_call.1} parent=1 // pred_region
      %136 = dma.done [#allocation5], 128
    $region33: #{tpu_custom_call.1} parent=1 // pred_fallthru
      _
    %137 = vsyncpa [#allocation4], 1
    %138 = vsyncpa [#allocation7], 1
    %139 = vsyncpa [#allocation5], 1

</llo_original>
